<compile_context>
chip_gen: v6e
topology: v6e:2x2x1
jax: 0.10.0
libtpu: 0.0.40
codegen_flags: <defaults>
</compile_context>

<pallas_src>
import functools

import jax
import jax.numpy as jnp
from jax.experimental import pallas as pl
from jax.experimental.pallas import tpu as pltpu


def _round_up(x, n):
    return ((x + n - 1) // n) * n


def _vmem_budget_bytes():
    """Generation-aware VMEM cap (~70% of per-core capacity)."""
    try:
        cap = int(pltpu.get_tpu_info().vmem_capacity_bytes)
    except Exception:
        cap = 64 * 1024 * 1024  # conservative: v7x has 64 MiB / TensorCore
    return int(cap * 0.7)


def _mlp_kernel(x_ref, w1_ref, b1_ref, w2_ref, b2_ref, o_ref, *, compute_dtype):
    x = x_ref[...]
    w1 = w1_ref[...]
    w2 = w2_ref[...]
    if compute_dtype is not None and jnp.dtype(compute_dtype) != x.dtype:
        # In-kernel cast (VPU work hidden under MXU/DMA slack): operands stay
        # f32 in HBM, matmul inputs become bf16, accumulation stays f32.
        x = x.astype(compute_dtype)
        w1 = w1.astype(compute_dtype)
        w2 = w2.astype(compute_dtype)
    # Linear1: (tm, H) @ (H, H2) -> f32 accumulator on the MXU.
    h = jnp.dot(x, w1, preferred_element_type=jnp.float32)
    # Bias + ReLU in f32 (native VPU path on all generations).
    h = jnp.maximum(h + b1_ref[...], 0.0)
    # Dropout(eval) == identity.
    # Linear2: (tm, H2) @ (H2, Tpad) -> f32 accumulator.
    out = jnp.dot(h.astype(w2.dtype), w2, preferred_element_type=jnp.float32)
    o_ref[...] = (out + b2_ref[...]).astype(o_ref.dtype)


def _choose_block_m(m, hidden, tag_pad, in_dsize, store_dsize, weight_bytes,
                    align, vmem_budget):
    """Row tile: largest that fits VMEM, but >=4 even grid steps when M is
    large enough for each v7x TensorCore to get >=2 pipelined steps."""
    m_al = _round_up(m, align)
    min_rows = 1024 if in_dsize < 4 else 512

    def tile_bytes(t):
        # x tile triple-buffered (pl.Buffered(3)), output tile double-buffered.
        return 3 * t * hidden * in_dsize + 2 * t * tag_pad * store_dsize

    avail = max(vmem_budget - weight_bytes, tile_bytes(align))
    tm_max = m_al
    while tm_max > align and tile_bytes(tm_max) > avail:
        tm_max = max(align, _round_up(tm_max // 2, align))

    if m_al <= min_rows:
        steps = 1                       # tiny problem: one tile
    elif m_al <= 4 * min_rows:
        steps = 2                       # one tile per TensorCore
    else:
        steps = max(4, pl.cdiv(m_al, tm_max))
        if steps % 2:
            steps += 1                  # equal work for both v7x cores
    tm = min(tm_max, _round_up(pl.cdiv(m_al, steps), align))
    return max(align, tm)


def _pallas_forward(x2d, w1, b1_2d, w2p, b2p, *, tm, store_dtype,
                    compute_dtype, vmem_cap):
    m_pad, hidden = x2d.shape
    h2 = w1.shape[1]
    tag_pad = w2p.shape[1]
    steps = m_pad // tm

    in_dsize = x2d.dtype.itemsize
    w_dsize = w1.dtype.itemsize
    store_dsize = jnp.dtype(store_dtype).itemsize

    # x tile DMA is the critical resource: deepen its pipeline on long grids.
    if steps >= 4:
        x_spec = pl.BlockSpec((tm, hidden), lambda i: (i, 0),
                              pipeline_mode=pl.Buffered(3))
        x_bufs = 3
    else:
        x_spec = pl.BlockSpec((tm, hidden), lambda i: (i, 0))
        x_bufs = 2

    # Grid-invariant weights/biases: default pipelining (Pallas skips re-DMA
    # because the index_map returns the same block every step).
    def w_spec(shape):
        return pl.BlockSpec(shape, lambda i: (0, 0))

    weight_bytes = 2 * ((hidden * h2 + h2 * tag_pad) * w_dsize
                        + (h2 + tag_pad) * 4)
    vmem_need = (weight_bytes
                 + x_bufs * tm * hidden * in_dsize
                 + 2 * tm * tag_pad * store_dsize)
    vmem_limit = min(max(int(vmem_need * 1.5) + (2 << 20), 16 << 20), vmem_cap)
    vmem_limit = max(vmem_limit, vmem_need + (1 << 20))

    flops = 2 * m_pad * (hidden * h2 + h2 * tag_pad)
    bytes_accessed = (x2d.size * in_dsize
                      + (w1.size + w2p.size) * w_dsize
                      + (b1_2d.size + b2p.size) * 4
                      + m_pad * tag_pad * store_dsize)
    cost = pl.CostEstimate(flops=flops, transcendentals=0,
                           bytes_accessed=bytes_accessed)

    kernel = functools.partial(_mlp_kernel, compute_dtype=compute_dtype)

    return pl.pallas_call(
        kernel,
        out_shape=jax.ShapeDtypeStruct((m_pad, tag_pad), store_dtype),
        grid_spec=pltpu.PrefetchScalarGridSpec(
            num_scalar_prefetch=0,
            grid=(steps,),
            in_specs=[
                x_spec,                    # x tile (row-tiled over M)
                w_spec((hidden, h2)),      # W1 (full, resident)
                w_spec((1, h2)),           # b1 (f32)
                w_spec((h2, tag_pad)),     # W2 (lane-padded, resident)
                w_spec((1, tag_pad)),      # b2 (lane-padded, f32)
            ],
            out_specs=pl.BlockSpec((tm, tag_pad), lambda i: (i, 0)),
        ),
        compiler_params=pltpu.CompilerParams(
            dimension_semantics=("parallel",),
            vmem_limit_bytes=vmem_limit),
        cost_estimate=cost,
    )(x2d, w1, b1_2d, w2p, b2p)


def multi_nonlinear_classifier(x, w1, b1, w2, b2, *, block_m=None,
                               compute_dtype=jnp.bfloat16):
    """y = Linear2(Dropout(ReLU(Linear1(x)))), inference mode.

    x: (batch, seq, hidden) -> (batch, seq, tag_size).  Weights are stored
    (in_features, out_features), i.e. transposed vs. nn.Linear.weight.

    compute_dtype: MXU operand dtype.  The cast happens *inside* the kernel
    (x / W keep their HBM dtype, accumulation stays f32).  Pass None (or
    x.dtype) for an exact full-precision path.
    """
    batch, seq, hidden = x.shape
    h2 = w1.shape[1]
    tag_size = w2.shape[1]
    out_dtype = x.dtype

    if (compute_dtype is not None
            and jnp.dtype(compute_dtype) == jnp.dtype(out_dtype)):
        compute_dtype = None  # the cast would be a no-op

    # Biases are applied in the f32 accumulator.
    b1_2d = b1.astype(jnp.float32).reshape(1, h2)
    b2_2d = b2.astype(jnp.float32).reshape(1, tag_size)

    # Lane-pad the output / W2 tail dim to a multiple of 128 (unmasked,
    # lane-dense stores); sliced back to tag_size below.
    tag_pad = _round_up(tag_size, 128)
    w2p, b2p = w2, b2_2d
    if tag_pad != tag_size:
        w2p = jnp.pad(w2, ((0, 0), (0, tag_pad - tag_size)))
        b2p = jnp.pad(b2_2d, ((0, 0), (0, tag_pad - tag_size)))

    m = batch * seq
    x2d = x.reshape(m, hidden)

    in_dsize = x2d.dtype.itemsize
    w_dsize = w1.dtype.itemsize
    align = 16 if in_dsize < 4 else 8  # bf16 packs 16 rows per sublane pair

    # Shrink the padded-output writeback when computing in a narrower dtype.
    if (compute_dtype is not None
            and jnp.dtype(compute_dtype).itemsize < jnp.dtype(out_dtype).itemsize):
        store_dtype = jnp.dtype(compute_dtype)
    else:
        store_dtype = jnp.dtype(out_dtype)

    vmem_cap = _vmem_budget_bytes()
    weight_bytes = 2 * ((hidden * h2 + h2 * tag_pad) * w_dsize
                        + (h2 + tag_pad) * 4)

    if block_m is None:
        tm = _choose_block_m(m, hidden, tag_pad, in_dsize,
                             store_dtype.itemsize, weight_bytes, align,
                             vmem_cap)
    else:
        tm = max(align, _round_up(int(block_m), align))

    # Pad M up to a multiple of the tile (padded rows sliced off below).
    m_pad = _round_up(m, tm)
    if m_pad != m:
        x2d = jnp.pad(x2d, ((0, m_pad - m), (0, 0)))

    out2d = _pallas_forward(x2d, w1, b1_2d, w2p, b2p, tm=tm,
                            store_dtype=store_dtype,
                            compute_dtype=compute_dtype, vmem_cap=vmem_cap)

    out = out2d[:m, :tag_size].reshape(batch, seq, tag_size)
    return out.astype(out_dtype)


def init_params(key, hidden_size, tag_size, dtype=jnp.float32):
    """Deterministic synthetic init matching nn.Linear shapes (stored transposed)."""
    h2 = hidden_size // 2
    k1, k2, k3, k4 = jax.random.split(key, 4)
    lim1 = 1.0 / (hidden_size ** 0.5)
    lim2 = 1.0 / (h2 ** 0.5)
    w1 = jax.random.uniform(k1, (hidden_size, h2), dtype, -lim1, lim1)
    b1 = jax.random.uniform(k2, (h2,), dtype, -lim1, lim1)
    w2 = jax.random.uniform(k3, (h2, tag_size), dtype, -lim2, lim2)
    b2 = jax.random.uniform(k4, (tag_size,), dtype, -lim2, lim2)
    return w1, b1, w2, b2


if __name__ == "__main__":
    # Small shapes implied by the forward: (batch, seq, hidden) token features.
    batch, seq, hidden, tag_size = 2, 8, 32, 8
    dropout_rate = 0.1  # unused at inference (Dropout is identity in eval mode)

    key = jax.random.PRNGKey(0)
    kx, kp = jax.random.split(key)
    x = jax.random.normal(kx, (batch, seq, hidden), jnp.float32)
    w1, b1, w2, b2 = init_params(kp, hidden, tag_size)

    ref = jnp.maximum(x.reshape(-1, hidden) @ w1 + b1, 0.0) @ w2 + b2
    ref = ref.reshape(batch, seq, tag_size)

    # Exact f32 path (tight check against pure-JAX reference).
    out_f32 = jax.block_until_ready(
        multi_nonlinear_classifier(x, w1, b1, w2, b2, compute_dtype=None))
    assert out_f32.shape == (batch, seq, tag_size)
    assert jnp.allclose(out_f32, ref, atol=1e-5, rtol=1e-5)

    # Default path: bf16 operands via in-kernel cast, f32 accumulation.
    out_def = jax.block_until_ready(
        multi_nonlinear_classifier(x, w1, b1, w2, b2))
    assert out_def.dtype == x.dtype
    assert jnp.allclose(out_def, ref, atol=5e-2, rtol=5e-2)

    # Ragged M (exercises the pad-to-block path) with an explicit tiny block.
    x_r = jax.random.normal(kx, (batch, 7, hidden), jnp.float32)
    out_r = jax.block_until_ready(
        multi_nonlinear_classifier(x_r, w1, b1, w2, b2, block_m=8,
                                   compute_dtype=None))
    ref_r = jnp.maximum(x_r.reshape(-1, hidden) @ w1 + b1, 0.0) @ w2 + b2
    assert jnp.allclose(out_r, ref_r.reshape(batch, 7, tag_size),
                        atol=1e-5, rtol=1e-5)

    # Larger M: exercises the >=4-step even grid and the Buffered(3) x tile.
    bL, sL, hL, tL = 4, 640, 64, 8
    xl = jax.random.normal(kx, (bL, sL, hL), jnp.float32)
    w1l, b1l, w2l, b2l = init_params(kp, hL, tL)
    out_l = jax.block_until_ready(
        multi_nonlinear_classifier(xl, w1l, b1l, w2l, b2l))
    ref_l = jnp.maximum(xl.reshape(-1, hL) @ w1l + b1l, 0.0) @ w2l + b2l
    assert jnp.allclose(out_l, ref_l.reshape(bL, sL, tL),
                        atol=1e-1, rtol=5e-2)

    print("KERNEL_OK")
</pallas_src>

<mosaic_0001>
module attributes {stable_mosaic.version = 11 : i64} {
  func.func @_mlp_kernel(%arg0: i32, %arg1: memref<16x32xf32, #tpu.memory_space<vmem>>, %arg2: memref<32x16xf32, #tpu.memory_space<vmem>>, %arg3: memref<1x16xf32, #tpu.memory_space<vmem>>, %arg4: memref<16x128xf32, #tpu.memory_space<vmem>>, %arg5: memref<1x128xf32, #tpu.memory_space<vmem>>, %arg6: memref<16x128xf32, #tpu.memory_space<vmem>>) attributes {dimension_semantics = [#tpu.dimension_semantics<parallel>], iteration_bounds = array<i64: 1>, scalar_prefetch = 0 : i64, scratch_operands = 0 : i64, tpu.core_type = #tpu.core_type<tc>, window_params = [{transform_indices = @transform_0, window_bounds = array<i64: 16, 32>}, {pipeline_mode = #tpu.pipeline_mode<synchronous>, transform_indices = @transform_1, window_bounds = array<i64: 32, 16>}, {pipeline_mode = #tpu.pipeline_mode<synchronous>, transform_indices = @transform_2, window_bounds = array<i64: 1, 16>}, {pipeline_mode = #tpu.pipeline_mode<synchronous>, transform_indices = @transform_3, window_bounds = array<i64: 16, 128>}, {pipeline_mode = #tpu.pipeline_mode<synchronous>, transform_indices = @transform_4, window_bounds = array<i64: 1, 128>}, {transform_indices = @transform_5, window_bounds = array<i64: 16, 128>}]} {
    %c0 = arith.constant 0 : index
    %c0_0 = arith.constant 0 : index
    %0 = vector.load %arg1[%c0, %c0_0] : memref<16x32xf32, #tpu.memory_space<vmem>>, vector<16x32xf32>
    %c0_1 = arith.constant 0 : index
    %c0_2 = arith.constant 0 : index
    %1 = vector.load %arg2[%c0_1, %c0_2] : memref<32x16xf32, #tpu.memory_space<vmem>>, vector<32x16xf32>
    %c0_3 = arith.constant 0 : index
    %c0_4 = arith.constant 0 : index
    %2 = vector.load %arg4[%c0_3, %c0_4] : memref<16x128xf32, #tpu.memory_space<vmem>>, vector<16x128xf32>
    %cst = arith.constant dense<0.000000e+00> : vector<16x16xf32>
    %3 = tpu.matmul %0, %1, %cst {dimension_numbers = #tpu.dot_dimension_numbers<[1], [0], [0], [1], [0, 0, 1, 1], [], []>} : vector<16x32xf32>, vector<32x16xf32>, vector<16x16xf32> -> vector<16x16xf32>
    %c0_5 = arith.constant 0 : index
    %c0_6 = arith.constant 0 : index
    %4 = vector.load %arg3[%c0_5, %c0_6] : memref<1x16xf32, #tpu.memory_space<vmem>>, vector<1x16xf32>
    %5 = vector.broadcast %4 : vector<1x16xf32> to vector<16x16xf32>
    %6 = arith.addf %3, %5 : vector<16x16xf32>
    %cst_7 = arith.constant 0.000000e+00 : f32
    %7 = vector.broadcast %cst_7 : f32 to vector<16x16xf32>
    %8 = arith.maximumf %6, %7 : vector<16x16xf32>
    %cst_8 = arith.constant dense<0.000000e+00> : vector<16x128xf32>
    %9 = tpu.matmul %8, %2, %cst_8 {dimension_numbers = #tpu.dot_dimension_numbers<[1], [0], [0], [1], [0, 0, 1, 1], [], []>} : vector<16x16xf32>, vector<16x128xf32>, vector<16x128xf32> -> vector<16x128xf32>
    %c0_9 = arith.constant 0 : index
    %c0_10 = arith.constant 0 : index
    %10 = vector.load %arg5[%c0_9, %c0_10] : memref<1x128xf32, #tpu.memory_space<vmem>>, vector<1x128xf32>
    %11 = vector.broadcast %10 : vector<1x128xf32> to vector<16x128xf32>
    %12 = arith.addf %9, %11 : vector<16x128xf32>
    %c0_11 = arith.constant 0 : index
    %c0_12 = arith.constant 0 : index
    %13 = vector.load %arg6[%c0_11, %c0_12] : memref<16x128xf32, #tpu.memory_space<vmem>>, vector<16x128xf32>
    tpu.vector_store %arg6[%c0_11, %c0_12], %12 {strides = array<i32>} : memref<16x128xf32, #tpu.memory_space<vmem>>, vector<16x128xf32>,
    return
  }
  func.func @transform_0(%arg0: i32) -> (i32, i32) {
    %c0_i32 = arith.constant 0 : i32
    %c0_i32_0 = arith.constant 0 : i32
    return %arg0, %c0_i32 : i32, i32
  }
  func.func @transform_1(%arg0: i32) -> (i32, i32) {
    %c0_i32 = arith.constant 0 : i32
    %c0_i32_0 = arith.constant 0 : i32
    %c0_i32_1 = arith.constant 0 : i32
    return %c0_i32, %c0_i32_0 : i32, i32
  }
  func.func @transform_2(%arg0: i32) -> (i32, i32) {
    %c0_i32 = arith.constant 0 : i32
    %c0_i32_0 = arith.constant 0 : i32
    %c0_i32_1 = arith.constant 0 : i32
    return %c0_i32, %c0_i32_0 : i32, i32
  }
  func.func @transform_3(%arg0: i32) -> (i32, i32) {
    %c0_i32 = arith.constant 0 : i32
    %c0_i32_0 = arith.constant 0 : i32
    %c0_i32_1 = arith.constant 0 : i32
    return %c0_i32, %c0_i32_0 : i32, i32
  }
  func.func @transform_4(%arg0: i32) -> (i32, i32) {
    %c0_i32 = arith.constant 0 : i32
    %c0_i32_0 = arith.constant 0 : i32
    %c0_i32_1 = arith.constant 0 : i32
    return %c0_i32, %c0_i32_0 : i32, i32
  }
  func.func @transform_5(%arg0: i32) -> (i32, i32) {
    %c0_i32 = arith.constant 0 : i32
    %c0_i32_0 = arith.constant 0 : i32
    return %arg0, %c0_i32 : i32, i32
  }
}

</mosaic_0001>

<llo_original>
// kernel: tpu_custom_call.1
$region0: #{tpu_custom_call.1}
  #allocation0 [shape = 'u32[]', space=smem, size = 0x4, offset = 0x4, fixed_abs, tag = 'smem constant byte address 0x4 - core index']
  #allocation1 [shape = 'u32[144,128]{1,0:T(1,128)}', space=vmem, size = 0x12000, scoped, tag = 'internal scratch']
  %s0 = inlined_call_operand.vmem [shape: f32[16,32], index: 0, kind: input, shape index: {}]
  %s1 = inlined_call_operand.vmem [shape: f32[32,16], index: 1, kind: input, shape index: {}]
  %s2 = inlined_call_operand.vmem [shape: f32[1,16], index: 2, kind: input, shape index: {}]
  %s3 = inlined_call_operand.vmem [shape: f32[16,128], index: 3, kind: input, shape index: {}]
  %s4 = inlined_call_operand.vmem [shape: f32[1,128], index: 4, kind: input, shape index: {}]
  %s5 = inlined_call_operand.hbm [shape: f32[16,128], index: 5, kind: output, shape index: {}]
  %s6 = sld [smem:[#allocation0]]
  $region30: #{tpu_custom_call.1} parent=0
    _
  %s8 = ssub.s32 1, %s6
  %s9 = scalar_select 0, %s8, %s6
  $region1: #{tpu_custom_call.1} parent=0
    #allocation2 [shape = 'u8[8192]{0}', space=vmem, size = 0x2000, scoped, tag = 'output window, operand 0, single buffered']
    #allocation3 [shape = 's32[1]{0}', space=sflag, size = 0x4, scoped, tag = 'scoped memory for tpu_custom_call.1']
    %10 = vsyncpa [#allocation3], 0
    // Predicated region
    $region2: #{tpu_custom_call.1} parent=1 // pred_check
      _
    $region3: #{tpu_custom_call.1} parent=1 // pred_check_branch
      %12 = sbr.rel (0) target = $region5
    $region4: #{tpu_custom_call.1} parent=1 // pred_region
      _
    $region5: #{tpu_custom_call.1} parent=1 // pred_fallthru
      _
    // Predicated region
    $region6: #{tpu_custom_call.1} parent=1 // pred_check
      _
    $region7: #{tpu_custom_call.1} parent=1 // pred_check_branch
      %14 = sbr.rel (0) target = $region9
    $region8: #{tpu_custom_call.1} parent=1 // pred_region
      _
    $region9: #{tpu_custom_call.1} parent=1 // pred_fallthru
      _
    // Predicated region
    $region10: #{tpu_custom_call.1} parent=1 // pred_check
      _
    $region11: #{tpu_custom_call.1} parent=1 // pred_check_branch
      %16 = sbr.rel (0) target = $region13
    $region12: #{tpu_custom_call.1} parent=1 // pred_region
      _
    $region13: #{tpu_custom_call.1} parent=1 // pred_fallthru
      _
    // Predicated region
    $region14: #{tpu_custom_call.1} parent=1 // pred_check
      _
    $region15: #{tpu_custom_call.1} parent=1 // pred_check_branch
      %18 = sbr.rel (0) target = $region17
    $region16: #{tpu_custom_call.1} parent=1 // pred_region
      _
    $region17: #{tpu_custom_call.1} parent=1 // pred_fallthru
      _
    // Predicated region
    $region18: #{tpu_custom_call.1} parent=1 // pred_check
      _
    $region19: #{tpu_custom_call.1} parent=1 // pred_check_branch
      %20 = sbr.rel (0) target = $region21
    $region20: #{tpu_custom_call.1} parent=1 // pred_region
      _
    $region21: #{tpu_custom_call.1} parent=1 // pred_fallthru
      _
    %v21 = vld [vmem:[%s0] sm:$0xff]
    %v22 = vld [vmem:[%s0 + $0x8] sm:$0xff]
    %v23 = vld [vmem:[%s1] sm:$0xff]
    %v24 = vld [vmem:[%s1 + $0x8] sm:$0xff]
    %v25 = vld [vmem:[%s1 + $0x10] sm:$0xff]
    %v26 = vld [vmem:[%s1 + $0x18] sm:$0xff]
    %v27 = vld [vmem:[%s3] sm:$0xff]
    %v28 = vld [vmem:[%s3 + $0x8] sm:$0xff]
    %v29 = vld [vmem:[%s2] sm:$0x1]
    %v31 = vlaneseq
    %v32 = vshrl.u32 %v31, 7
    %v33 = vsub.s32 0, %v32
    %v34 = vrot.slane %v29, %v33
    %vm36 = vcmask 261120
    %v38 = vsel %vm36, %v21, 0
    %v41 = vsel %vm36, %v22, 0
    %43 = vmatprep.subr.mxu0 0.0
    %44 = vmatpush1.msra.mxu0 0.0
    %45 = vmatprep.subr.mxu0 0.0
    %46 = vmatpush1.msra.mxu0 0.0
    %47 = vmatprep.subr.mxu0 0.0
    %48 = vmatpush1.msra.mxu0 0.0
    %49 = vmatprep.subr.mxu0 0.0
    %50 = vmatpush1.msra.mxu0 0.0
    %51 = vmatprep.subr.mxu0 0.0
    %52 = vmatpush1.msra.mxu0 0.0
    %53 = vmatprep.subr.mxu0 0.0
    %54 = vmatpush1.msra.mxu0 0.0
    %55 = vmatprep.subr.mxu0 0.0
    %56 = vmatpush1.msra.mxu0 0.0
    %57 = vmatprep.subr.mxu0 0.0
    %58 = vmatpush1.msra.mxu0 0.0
    %59 = vmatprep.subr.mxu0 0.0
    %60 = vmatpush1.msra.mxu0 0.0
    %61 = vmatprep.subr.mxu0 0.0
    %62 = vmatpush1.msra.mxu0 0.0
    %63 = vmatprep.subr.mxu0 0.0
    %64 = vmatpush1.msra.mxu0 0.0
    %65 = vmatprep.subr.mxu0 0.0
    %66 = vmatpush1.msra.mxu0 0.0
    %67 = vmatprep.subr.mxu0 0.0
    %68 = vmatpush1.msra.mxu0 %v26
    %69 = vmatprep.subr.mxu0 0.0
    %70 = vmatpush1.msra.mxu0 %v25
    %71 = vmatprep.subr.mxu0 0.0
    %72 = vmatpush1.msra.mxu0 %v24
    %73 = vmatprep.subr.mxu0 0.0
    %74 = vmatpush1.msra.mxu0 %v23
    %75 = vmatprep.subr.mxu0 0.0
    %76 = vmatpush2.msra.mxu0 0.0
    %77 = vmatprep.subr.mxu0 0.0
    %78 = vmatpush2.msra.mxu0 0.0
    %79 = vmatprep.subr.mxu0 0.0
    %80 = vmatpush2.msra.mxu0 0.0
    %81 = vmatprep.subr.mxu0 0.0
    %82 = vmatpush2.msra.mxu0 0.0
    %83 = vmatprep.subr.mxu0 0.0
    %84 = vmatpush2.msra.mxu0 0.0
    %85 = vmatprep.subr.mxu0 0.0
    %86 = vmatpush2.msra.mxu0 0.0
    %87 = vmatprep.subr.mxu0 0.0
    %88 = vmatpush2.msra.mxu0 0.0
    %89 = vmatprep.subr.mxu0 0.0
    %90 = vmatpush2.msra.mxu0 0.0
    %91 = vmatprep.subr.mxu0 0.0
    %92 = vmatpush2.msra.mxu0 0.0
    %93 = vmatprep.subr.mxu0 0.0
    %94 = vmatpush2.msra.mxu0 0.0
    %95 = vmatprep.subr.mxu0 0.0
    %96 = vmatpush2.msra.mxu0 0.0
    %97 = vmatprep.subr.mxu0 0.0
    %98 = vmatpush2.msra.mxu0 0.0
    %99 = vmatprep.subr.mxu0 0.0
    %100 = vmatpush2.msra.mxu0 0.0
    %101 = vmatprep.subr.mxu0 0.0
    %102 = vmatpush2.msra.mxu0 0.0
    %103 = vmatprep.subr.mxu0 0.0
    %104 = vmatpush2.msra.mxu0 0.0
    %105 = vmatprep.subr.mxu0 0.0
    %106 = vmatpush2.msra.mxu0 0.0
    %107 = vmatprep.mubr.f32.mxu0 0.0
    %108 = vmatmul.mubr.f32.gmra.mxu0 %v38
    %v109 = vpop.f32.mrf.mxu0
    %v110 = vadd.f32 %v34, %v109
    %v111 = vpop.f32.mrf.mxu0
    %112 = vmatprep.mubr.f32.mxu0 0.0
    %113 = vmatmul.mubr.f32.gmra.mxu0 %v41
    %v114 = vpop.f32.mrf.mxu0
    %v115 = vadd.f32 %v34, %v114
    %v116 = vpop.f32.mrf.mxu0
    %117 = vdwg.mxu0
    %v118 = vmax.f32 %v110, 0.0
    %v119 = vmax.f32 %v115, 0.0
    %v120 = vld [vmem:[%s4] sm:$0x1]
    %v122 = vlaneseq
    %v123 = vshrl.u32 %v122, 7
    %v124 = vsub.s32 0, %v123
    %v125 = vrot.slane %v120, %v124
    %vm127 = vcmask 130048
    %v129 = vsel %vm127, %v118, 0
    %v132 = vsel %vm127, %v119, 0
    %134 = vmatprep.subr.mxu0 0.0
    %135 = vmatpush1.msra.mxu0 0.0
    %136 = vmatprep.subr.mxu0 0.0
    %137 = vmatpush1.msra.mxu0 0.0
    %138 = vmatprep.subr.mxu0 0.0
    %139 = vmatpush1.msra.mxu0 0.0
    %140 = vmatprep.subr.mxu0 0.0
    %141 = vmatpush1.msra.mxu0 0.0
    %142 = vmatprep.subr.mxu0 0.0
    %143 = vmatpush1.msra.mxu0 0.0
    %144 = vmatprep.subr.mxu0 0.0
    %145 = vmatpush1.msra.mxu0 0.0
    %146 = vmatprep.subr.mxu0 0.0
    %147 = vmatpush1.msra.mxu0 0.0
    %148 = vmatprep.subr.mxu0 0.0
    %149 = vmatpush1.msra.mxu0 0.0
    %150 = vmatprep.subr.mxu0 0.0
    %151 = vmatpush1.msra.mxu0 0.0
    %152 = vmatprep.subr.mxu0 0.0
    %153 = vmatpush1.msra.mxu0 0.0
    %154 = vmatprep.subr.mxu0 0.0
    %155 = vmatpush1.msra.mxu0 0.0
    %156 = vmatprep.subr.mxu0 0.0
    %157 = vmatpush1.msra.mxu0 0.0
    %158 = vmatprep.subr.mxu0 0.0
    %159 = vmatpush1.msra.mxu0 0.0
    %160 = vmatprep.subr.mxu0 0.0
    %161 = vmatpush1.msra.mxu0 0.0
    %162 = vmatprep.subr.mxu0 0.0
    %163 = vmatpush1.msra.mxu0 %v28
    %164 = vmatprep.subr.mxu0 0.0
    %165 = vmatpush1.msra.mxu0 %v27
    %166 = vmatprep.subr.mxu0 0.0
    %167 = vmatpush2.msra.mxu0 0.0
    %168 = vmatprep.subr.mxu0 0.0
    %169 = vmatpush2.msra.mxu0 0.0
    %170 = vmatprep.subr.mxu0 0.0
    %171 = vmatpush2.msra.mxu0 0.0
    %172 = vmatprep.subr.mxu0 0.0
    %173 = vmatpush2.msra.mxu0 0.0
    %174 = vmatprep.subr.mxu0 0.0
    %175 = vmatpush2.msra.mxu0 0.0
    %176 = vmatprep.subr.mxu0 0.0
    %177 = vmatpush2.msra.mxu0 0.0
    %178 = vmatprep.subr.mxu0 0.0
    %179 = vmatpush2.msra.mxu0 0.0
    %180 = vmatprep.subr.mxu0 0.0
    %181 = vmatpush2.msra.mxu0 0.0
    %182 = vmatprep.subr.mxu0 0.0
    %183 = vmatpush2.msra.mxu0 0.0
    %184 = vmatprep.subr.mxu0 0.0
    %185 = vmatpush2.msra.mxu0 0.0
    %186 = vmatprep.subr.mxu0 0.0
    %187 = vmatpush2.msra.mxu0 0.0
    %188 = vmatprep.subr.mxu0 0.0
    %189 = vmatpush2.msra.mxu0 0.0
    %190 = vmatprep.subr.mxu0 0.0
    %191 = vmatpush2.msra.mxu0 0.0
    %192 = vmatprep.subr.mxu0 0.0
    %193 = vmatpush2.msra.mxu0 0.0
    %194 = vmatprep.subr.mxu0 0.0
    %195 = vmatpush2.msra.mxu0 0.0
    %196 = vmatprep.subr.mxu0 0.0
    %197 = vmatpush2.msra.mxu0 0.0
    %198 = vmatprep.mubr.f32.mxu0 0.0
    %199 = vmatmul.mubr.f32.gmra.mxu0 %v129
    %v200 = vpop.f32.mrf.mxu0
    %v201 = vadd.f32 %v125, %v200
    %v202 = vpop.f32.mrf.mxu0
    %203 = vmatprep.mubr.f32.mxu0 0.0
    %204 = vmatmul.mubr.f32.gmra.mxu0 %v132
    %v205 = vpop.f32.mrf.mxu0
    %v206 = vadd.f32 %v125, %v205
    %v207 = vpop.f32.mrf.mxu0
    %208 = vdwg.mxu0
    %209 = vst [vmem:[#allocation2] sm:$0xff] %v201
    %210 = vst [vmem:[#allocation2 + $0x8] sm:$0xff] %v206
    // Predicated region
    $region22: #{tpu_custom_call.1} parent=1 // pred_check
      _
    $region23: #{tpu_custom_call.1} parent=1 // pred_check_branch
      %212 = sbr.rel (0) target = $region25
    $region24: #{tpu_custom_call.1} parent=1 // pred_region
      %s214 = ssub.s32 256, 256
      %215 = vsyncadd [#allocation3], %s214
      %s216 = sshll.u32 [#allocation2], 4
      %s217 = int_to_ptr.vmem [resolvable:$true] %s216
      %222 = dma.vmem_to_hbm [thread:$0]  %s217, 256, %s5, [#allocation3], 128, 128, 8
    $region25: #{tpu_custom_call.1} parent=1 // pred_fallthru
      _
    // Predicated region
    $region26: #{tpu_custom_call.1} parent=1 // pred_check
      _
    $region27: #{tpu_custom_call.1} parent=1 // pred_check_branch
      %224 = sbr.rel (0) target = $region29
    $region28: #{tpu_custom_call.1} parent=1 // pred_region
      %225 = dma.done [#allocation3], 256
    $region29: #{tpu_custom_call.1} parent=1 // pred_fallthru
      _
    %226 = vsyncpa [#allocation3], 1

</llo_original>
